<compile_context>
chip_gen: v6e
topology: v6e:2x2x1
jax: 0.10.0
libtpu: 0.0.40
codegen_flags: <defaults>
</compile_context>

<pallas_src>
from functools import partial

import jax
import jax.numpy as jnp
from jax.experimental import pallas as pl
from jax.experimental.pallas import tpu as pltpu


def _make_divisible(v, divisor, min_value=None):
    if min_value is None:
        min_value = divisor
    new_v = max(min_value, int(v + divisor / 2) // divisor * divisor)
    if new_v < 0.9 * v:
        new_v += divisor
    return new_v


def _hardswish(x):
    # PyTorch nn.Hardswish: x * relu6(x + 3) / 6
    return x * jnp.clip(x + 3.0, 0.0, 6.0) * (1.0 / 6.0)


def ca_kernel(x_ref, ph_ref, pw_ref, w1_ref, b1_ref, wh_ref, bh_ref,
              ww_ref, bw_ref, o_ref, *, nb, h, w):
    """One grid step = `nb` images of Coordinate Attention.

    x_ref : (NB, C, H*W)  lane-dense input tile
    ph_ref: (H*W, H)      width-pooling matrix (entries 1/W)
    pw_ref: (H*W, W)      height-pooling matrix (entries 1/H)
    w1_ref: (MIP, C)      conv1 1x1 weight (BN folded), f32
    b1_ref: (MIP, 1)      conv1 bias (BN folded), f32
    wh_ref: (C, MIP)      conv_h 1x1 weight, f32
    bh_ref: (C, 1)        conv_h bias, f32
    ww_ref: (C, MIP)      conv_w 1x1 weight, f32
    bw_ref: (C, 1)        conv_w bias, f32
    o_ref : (NB, C, H*W)  lane-dense output tile
    """
    hw = h * w
    ph = ph_ref[...]
    pw = pw_ref[...]
    w1 = w1_ref[...]
    b1 = b1_ref[...]
    wh = wh_ref[...]
    bh = bh_ref[...]
    ww = ww_ref[...]
    bw = bw_ref[...]

    for b in range(nb):                       # static unroll; nb is small
        xb = x_ref[b]                         # (C, HW), input dtype, lane-dense
        c = xb.shape[0]

        # Average pools as MXU dots with f32 accumulation (no XLU reductions).
        xh = jnp.dot(xb, ph, preferred_element_type=jnp.float32)      # (C, H)
        xw = jnp.dot(xb, pw, preferred_element_type=jnp.float32)      # (C, W)

        # conv1 (1x1, BN folded) + Hardswish — two small dots, no concat/slice.
        yh = _hardswish(jnp.dot(w1, xh, preferred_element_type=jnp.float32) + b1)
        yw = _hardswish(jnp.dot(w1, xw, preferred_element_type=jnp.float32) + b1)

        # conv_h / conv_w (1x1) + sigmoid.
        ah = jax.nn.sigmoid(
            jnp.dot(wh, yh, preferred_element_type=jnp.float32) + bh)  # (C, H)
        aw = jax.nn.sigmoid(
            jnp.dot(ww, yw, preferred_element_type=jnp.float32) + bw)  # (C, W)

        # Build the attention map in VMEM and flatten to the lane-dense layout;
        # final multiply stays in the input dtype.
        scale = (ah[:, :, None] * aw[:, None, :]).reshape(c, hw)
        o_ref[b] = (xb * scale.astype(xb.dtype)).astype(o_ref.dtype)


def _pick_nb(n, per_image_bytes, budget_bytes=8 << 20):
    """Largest divisor of n whose double-buffered in+out blocks fit the budget,
    keeping >= 2 grid steps when possible (v7x has 2 TensorCores)."""
    if n <= 1:
        return 1
    max_nb = max(1, min(n // 2, budget_bytes // max(1, 4 * per_image_bytes)))
    for cand in range(int(max_nb), 0, -1):
        if n % cand == 0:
            return cand
    return 1


def ca_forward(x, w1, b1, wh, bh, ww, bw):
    n, c, h, w = x.shape
    hw = h * w
    mip = w1.shape[0]
    itemsize = x.dtype.itemsize

    # Lane-dense view (free for contiguous NCHW).
    x_flat = x.reshape(n, c, hw)

    # Constant pooling matrices: x_flat @ ph == mean over W, x_flat @ pw == mean over H.
    sidx = jnp.arange(hw)
    ph = ((sidx[:, None] // w) == jnp.arange(h)[None, :]).astype(jnp.float32) * (1.0 / w)
    pw = ((sidx[:, None] % w) == jnp.arange(w)[None, :]).astype(jnp.float32) * (1.0 / h)
    ph = ph.astype(x.dtype)
    pw = pw.astype(x.dtype)

    nb = _pick_nb(n, c * hw * itemsize)
    grid = (n // nb,)

    # VMEM budget: double-buffered in + out blocks plus resident constants.
    blk_bytes = 2 * 2 * nb * c * hw * itemsize
    aux_bytes = hw * (h + w) * itemsize + 4 * (2 * mip * c + mip + 2 * c)
    vmem_limit = int(min(max(4 * (blk_bytes + aux_bytes), 16 << 20), 64 << 20))

    flops_per_image = (
        2 * c * hw * (h + w)       # pooling dots
        + 2 * mip * c * (h + w)    # conv1 (both branches)
        + 2 * c * mip * (h + w)    # conv_h / conv_w
        + 3 * c * hw               # attention-map build + final scaling
    )
    cost = pl.CostEstimate(
        flops=int(n * flops_per_image),
        transcendentals=int(n * c * (h + w)),
        bytes_accessed=int(2 * n * c * hw * itemsize
                           + (hw * (h + w)) * itemsize
                           + 4 * (2 * mip * c + mip + 2 * c)),
    )

    kernel = partial(ca_kernel, nb=nb, h=h, w=w)
    out_flat = pl.pallas_call(
        kernel,
        out_shape=jax.ShapeDtypeStruct((n, c, hw), x.dtype),
        grid=grid,
        in_specs=[
            pl.BlockSpec((nb, c, hw), lambda i: (i, 0, 0)),
            pl.BlockSpec((hw, h), lambda i: (0, 0)),
            pl.BlockSpec((hw, w), lambda i: (0, 0)),
            pl.BlockSpec((mip, c), lambda i: (0, 0)),
            pl.BlockSpec((mip, 1), lambda i: (0, 0)),
            pl.BlockSpec((c, mip), lambda i: (0, 0)),
            pl.BlockSpec((c, 1), lambda i: (0, 0)),
            pl.BlockSpec((c, mip), lambda i: (0, 0)),
            pl.BlockSpec((c, 1), lambda i: (0, 0)),
        ],
        out_specs=pl.BlockSpec((nb, c, hw), lambda i: (i, 0, 0)),
        compiler_params=pltpu.CompilerParams(
            dimension_semantics=("parallel",),
            vmem_limit_bytes=vmem_limit,
        ),
        cost_estimate=cost,
    )(x_flat, ph, pw, w1, b1.reshape(mip, 1), wh, bh.reshape(c, 1),
      ww, bw.reshape(c, 1))

    return out_flat.reshape(n, c, h, w)


def ca_reference(x, raw):
    """Pure-JAX reference (unfolded BN, eval mode) for verification."""
    w1, b1, gamma, beta, r_mean, r_var, wh, bh, ww, bw = raw
    n, c, h, w = x.shape
    x_h = jnp.mean(x, axis=3)                        # (n, c, h)
    x_w = jnp.mean(x, axis=2)                        # (n, c, w)
    y = jnp.concatenate([x_h, x_w], axis=2)          # (n, c, h+w)
    y = jnp.einsum("mc,ncs->nms", w1, y) + b1[None, :, None]
    y = (y - r_mean[None, :, None]) / jnp.sqrt(r_var[None, :, None] + 1e-5)
    y = y * gamma[None, :, None] + beta[None, :, None]
    y = _hardswish(y)
    yh, yw = y[:, :, :h], y[:, :, h:]
    a_h = jax.nn.sigmoid(jnp.einsum("cm,nms->ncs", wh, yh) + bh[None, :, None])  # (n,c,h)
    a_w = jax.nn.sigmoid(jnp.einsum("cm,nms->ncs", ww, yw) + bw[None, :, None])  # (n,c,w)
    return x * a_h[:, :, :, None] * a_w[:, :, None, :]


if __name__ == "__main__":
    key = jax.random.PRNGKey(0)
    N, C, H, W = 2, 4, 16, 16
    reduction = 16
    MIP = _make_divisible(C // reduction, 8)         # = 8

    keys = jax.random.split(key, 12)
    x = jax.random.normal(keys[0], (N, C, H, W), dtype=jnp.float32)

    # Deterministic parameter init (conv weights as (out, in) for 1x1 convs).
    w1 = jax.random.normal(keys[1], (MIP, C), dtype=jnp.float32) * 0.2
    b1 = jax.random.normal(keys[2], (MIP,), dtype=jnp.float32) * 0.1
    gamma = 1.0 + 0.1 * jax.random.normal(keys[3], (MIP,), dtype=jnp.float32)
    beta = 0.1 * jax.random.normal(keys[4], (MIP,), dtype=jnp.float32)
    r_mean = 0.05 * jax.random.normal(keys[5], (MIP,), dtype=jnp.float32)
    r_var = 1.0 + 0.1 * jax.random.uniform(keys[6], (MIP,), dtype=jnp.float32)
    wh = jax.random.normal(keys[7], (C, MIP), dtype=jnp.float32) * 0.2
    bh = jax.random.normal(keys[8], (C,), dtype=jnp.float32) * 0.1
    ww = jax.random.normal(keys[9], (C, MIP), dtype=jnp.float32) * 0.2
    bw = jax.random.normal(keys[10], (C,), dtype=jnp.float32) * 0.1

    # Fold eval-mode BatchNorm into conv1 (exact): scale = gamma / sqrt(var+eps)
    eps = 1e-5
    scale = gamma / jnp.sqrt(r_var + eps)
    w1_f = w1 * scale[:, None]
    b1_f = (b1 - r_mean) * scale + beta

    out = ca_forward(x, w1_f, b1_f, wh, bh, ww, bw)
    out = jax.block_until_ready(out)

    ref = ca_reference(x, (w1, b1, gamma, beta, r_mean, r_var, wh, bh, ww, bw))
    assert out.shape == x.shape
    assert jnp.allclose(out, ref, atol=1e-5, rtol=1e-5), "mismatch vs reference"

    print("KERNEL_OK")
</pallas_src>

<mosaic_0001>
module attributes {stable_mosaic.version = 11 : i64} {
  func.func @ca_kernel(%arg0: i32, %arg1: memref<1x4x256xf32, #tpu.memory_space<vmem>>, %arg2: memref<256x16xf32, #tpu.memory_space<vmem>>, %arg3: memref<256x16xf32, #tpu.memory_space<vmem>>, %arg4: memref<8x4xf32, #tpu.memory_space<vmem>>, %arg5: memref<8x1xf32, #tpu.memory_space<vmem>>, %arg6: memref<4x8xf32, #tpu.memory_space<vmem>>, %arg7: memref<4x1xf32, #tpu.memory_space<vmem>>, %arg8: memref<4x8xf32, #tpu.memory_space<vmem>>, %arg9: memref<4x1xf32, #tpu.memory_space<vmem>>, %arg10: memref<1x4x256xf32, #tpu.memory_space<vmem>>) attributes {dimension_semantics = [#tpu.dimension_semantics<parallel>], iteration_bounds = array<i64: 2>, scalar_prefetch = 0 : i64, scratch_operands = 0 : i64, tpu.core_type = #tpu.core_type<tc>, window_params = [{transform_indices = @transform_0, window_bounds = array<i64: 1, 4, 256>}, {pipeline_mode = #tpu.pipeline_mode<synchronous>, transform_indices = @transform_1, window_bounds = array<i64: 256, 16>}, {pipeline_mode = #tpu.pipeline_mode<synchronous>, transform_indices = @transform_2, window_bounds = array<i64: 256, 16>}, {pipeline_mode = #tpu.pipeline_mode<synchronous>, transform_indices = @transform_3, window_bounds = array<i64: 8, 4>}, {pipeline_mode = #tpu.pipeline_mode<synchronous>, transform_indices = @transform_4, window_bounds = array<i64: 8, 1>}, {pipeline_mode = #tpu.pipeline_mode<synchronous>, transform_indices = @transform_5, window_bounds = array<i64: 4, 8>}, {pipeline_mode = #tpu.pipeline_mode<synchronous>, transform_indices = @transform_6, window_bounds = array<i64: 4, 1>}, {pipeline_mode = #tpu.pipeline_mode<synchronous>, transform_indices = @transform_7, window_bounds = array<i64: 4, 8>}, {pipeline_mode = #tpu.pipeline_mode<synchronous>, transform_indices = @transform_8, window_bounds = array<i64: 4, 1>}, {transform_indices = @transform_9, window_bounds = array<i64: 1, 4, 256>}]} {
    %c0 = arith.constant 0 : index
    %c0_0 = arith.constant 0 : index
    %0 = vector.load %arg2[%c0, %c0_0] : memref<256x16xf32, #tpu.memory_space<vmem>>, vector<256x16xf32>
    %c0_1 = arith.constant 0 : index
    %c0_2 = arith.constant 0 : index
    %1 = vector.load %arg3[%c0_1, %c0_2] : memref<256x16xf32, #tpu.memory_space<vmem>>, vector<256x16xf32>
    %c0_3 = arith.constant 0 : index
    %c0_4 = arith.constant 0 : index
    %2 = vector.load %arg4[%c0_3, %c0_4] : memref<8x4xf32, #tpu.memory_space<vmem>>, vector<8x4xf32>
    %c0_5 = arith.constant 0 : index
    %c0_6 = arith.constant 0 : index
    %3 = vector.load %arg5[%c0_5, %c0_6] : memref<8x1xf32, #tpu.memory_space<vmem>>, vector<8x1xf32>
    %c0_7 = arith.constant 0 : index
    %c0_8 = arith.constant 0 : index
    %4 = vector.load %arg6[%c0_7, %c0_8] : memref<4x8xf32, #tpu.memory_space<vmem>>, vector<4x8xf32>
    %c0_9 = arith.constant 0 : index
    %c0_10 = arith.constant 0 : index
    %5 = vector.load %arg7[%c0_9, %c0_10] : memref<4x1xf32, #tpu.memory_space<vmem>>, vector<4x1xf32>
    %c0_11 = arith.constant 0 : index
    %c0_12 = arith.constant 0 : index
    %6 = vector.load %arg8[%c0_11, %c0_12] : memref<4x8xf32, #tpu.memory_space<vmem>>, vector<4x8xf32>
    %c0_13 = arith.constant 0 : index
    %c0_14 = arith.constant 0 : index
    %7 = vector.load %arg9[%c0_13, %c0_14] : memref<4x1xf32, #tpu.memory_space<vmem>>, vector<4x1xf32>
    %c0_15 = arith.constant 0 : index
    %c0_16 = arith.constant 0 : index
    %c0_17 = arith.constant 0 : index
    %8 = vector.load %arg1[%c0_15, %c0_16, %c0_17] : memref<1x4x256xf32, #tpu.memory_space<vmem>>, vector<1x4x256xf32>
    %9 = vector.shape_cast %8 : vector<1x4x256xf32> to vector<4x256xf32>
    %cst = arith.constant dense<0.000000e+00> : vector<4x16xf32>
    %10 = tpu.matmul %9, %0, %cst {dimension_numbers = #tpu.dot_dimension_numbers<[1], [0], [0], [1], [0, 0, 1, 1], [], []>} : vector<4x256xf32>, vector<256x16xf32>, vector<4x16xf32> -> vector<4x16xf32>
    %cst_18 = arith.constant dense<0.000000e+00> : vector<4x16xf32>
    %11 = tpu.matmul %9, %1, %cst_18 {dimension_numbers = #tpu.dot_dimension_numbers<[1], [0], [0], [1], [0, 0, 1, 1], [], []>} : vector<4x256xf32>, vector<256x16xf32>, vector<4x16xf32> -> vector<4x16xf32>
    %cst_19 = arith.constant dense<0.000000e+00> : vector<8x16xf32>
    %12 = tpu.matmul %2, %10, %cst_19 {dimension_numbers = #tpu.dot_dimension_numbers<[1], [0], [0], [1], [0, 0, 1, 1], [], []>} : vector<8x4xf32>, vector<4x16xf32>, vector<8x16xf32> -> vector<8x16xf32>
    %13 = vector.broadcast %3 : vector<8x1xf32> to vector<8x16xf32>
    %14 = arith.addf %12, %13 : vector<8x16xf32>
    %cst_20 = arith.constant 3.000000e+00 : f32
    %15 = vector.broadcast %cst_20 : f32 to vector<8x16xf32>
    %16 = arith.addf %14, %15 : vector<8x16xf32>
    %cst_21 = arith.constant 0.000000e+00 : f32
    %cst_22 = arith.constant 6.000000e+00 : f32
    %17 = vector.broadcast %cst_21 : f32 to vector<8x16xf32>
    %18 = arith.maximumf %17, %16 : vector<8x16xf32>
    %19 = vector.broadcast %cst_22 : f32 to vector<8x16xf32>
    %20 = arith.minimumf %19, %18 : vector<8x16xf32>
    %21 = arith.mulf %14, %20 : vector<8x16xf32>
    %cst_23 = arith.constant 0.166666672 : f32
    %22 = vector.broadcast %cst_23 : f32 to vector<8x16xf32>
    %23 = arith.mulf %21, %22 : vector<8x16xf32>
    %cst_24 = arith.constant dense<0.000000e+00> : vector<8x16xf32>
    %24 = tpu.matmul %2, %11, %cst_24 {dimension_numbers = #tpu.dot_dimension_numbers<[1], [0], [0], [1], [0, 0, 1, 1], [], []>} : vector<8x4xf32>, vector<4x16xf32>, vector<8x16xf32> -> vector<8x16xf32>
    %25 = vector.broadcast %3 : vector<8x1xf32> to vector<8x16xf32>
    %26 = arith.addf %24, %25 : vector<8x16xf32>
    %cst_25 = arith.constant 3.000000e+00 : f32
    %27 = vector.broadcast %cst_25 : f32 to vector<8x16xf32>
    %28 = arith.addf %26, %27 : vector<8x16xf32>
    %cst_26 = arith.constant 0.000000e+00 : f32
    %cst_27 = arith.constant 6.000000e+00 : f32
    %29 = vector.broadcast %cst_26 : f32 to vector<8x16xf32>
    %30 = arith.maximumf %29, %28 : vector<8x16xf32>
    %31 = vector.broadcast %cst_27 : f32 to vector<8x16xf32>
    %32 = arith.minimumf %31, %30 : vector<8x16xf32>
    %33 = arith.mulf %26, %32 : vector<8x16xf32>
    %cst_28 = arith.constant 0.166666672 : f32
    %34 = vector.broadcast %cst_28 : f32 to vector<8x16xf32>
    %35 = arith.mulf %33, %34 : vector<8x16xf32>
    %cst_29 = arith.constant dense<0.000000e+00> : vector<4x16xf32>
    %36 = tpu.matmul %4, %23, %cst_29 {dimension_numbers = #tpu.dot_dimension_numbers<[1], [0], [0], [1], [0, 0, 1, 1], [], []>} : vector<4x8xf32>, vector<8x16xf32>, vector<4x16xf32> -> vector<4x16xf32>
    %37 = vector.broadcast %5 : vector<4x1xf32> to vector<4x16xf32>
    %38 = arith.addf %36, %37 : vector<4x16xf32>
    %39 = arith.negf %38 : vector<4x16xf32>
    %40 = math.exp %39 : vector<4x16xf32>
    %cst_30 = arith.constant 1.000000e+00 : f32
    %41 = vector.broadcast %cst_30 : f32 to vector<4x16xf32>
    %42 = arith.addf %41, %40 : vector<4x16xf32>
    %43 = arith.divf %41, %42 : vector<4x16xf32>
    %cst_31 = arith.constant dense<0.000000e+00> : vector<4x16xf32>
    %44 = tpu.matmul %6, %35, %cst_31 {dimension_numbers = #tpu.dot_dimension_numbers<[1], [0], [0], [1], [0, 0, 1, 1], [], []>} : vector<4x8xf32>, vector<8x16xf32>, vector<4x16xf32> -> vector<4x16xf32>
    %45 = vector.broadcast %7 : vector<4x1xf32> to vector<4x16xf32>
    %46 = arith.addf %44, %45 : vector<4x16xf32>
    %47 = arith.negf %46 : vector<4x16xf32>
    %48 = math.exp %47 : vector<4x16xf32>
    %cst_32 = arith.constant 1.000000e+00 : f32
    %49 = vector.broadcast %cst_32 : f32 to vector<4x16xf32>
    %50 = arith.addf %49, %48 : vector<4x16xf32>
    %51 = arith.divf %49, %50 : vector<4x16xf32>
    %52 = vector.shape_cast %43 : vector<4x16xf32> to vector<4x16x1xf32>
    %53 = vector.shape_cast %51 : vector<4x16xf32> to vector<4x1x16xf32>
    %54 = vector.broadcast %52 : vector<4x16x1xf32> to vector<4x16x16xf32>
    %55 = vector.broadcast %53 : vector<4x1x16xf32> to vector<4x16x16xf32>
    %56 = arith.mulf %54, %55 : vector<4x16x16xf32>
    %57 = vector.shape_cast %56 : vector<4x16x16xf32> to vector<4x256xf32>
    %58 = arith.mulf %9, %57 : vector<4x256xf32>
    %c0_33 = arith.constant 0 : index
    %c0_34 = arith.constant 0 : index
    %c0_35 = arith.constant 0 : index
    %59 = vector.load %arg10[%c0_33, %c0_34, %c0_35] : memref<1x4x256xf32, #tpu.memory_space<vmem>>, vector<1x4x256xf32>
    %60 = vector.shape_cast %59 : vector<1x4x256xf32> to vector<4x256xf32>
    %61 = vector.shape_cast %58 : vector<4x256xf32> to vector<1x4x256xf32>
    tpu.vector_store %arg10[%c0_33, %c0_34, %c0_35], %61 {strides = array<i32>} : memref<1x4x256xf32, #tpu.memory_space<vmem>>, vector<1x4x256xf32>,
    return
  }
  func.func @transform_0(%arg0: i32) -> (i32, i32, i32) {
    %c0_i32 = arith.constant 0 : i32
    %c0_i32_0 = arith.constant 0 : i32
    %c0_i32_1 = arith.constant 0 : i32
    return %arg0, %c0_i32, %c0_i32_0 : i32, i32, i32
  }
  func.func @transform_1(%arg0: i32) -> (i32, i32) {
    %c0_i32 = arith.constant 0 : i32
    %c0_i32_0 = arith.constant 0 : i32
    %c0_i32_1 = arith.constant 0 : i32
    return %c0_i32, %c0_i32_0 : i32, i32
  }
  func.func @transform_2(%arg0: i32) -> (i32, i32) {
    %c0_i32 = arith.constant 0 : i32
    %c0_i32_0 = arith.constant 0 : i32
    %c0_i32_1 = arith.constant 0 : i32
    return %c0_i32, %c0_i32_0 : i32, i32
  }
  func.func @transform_3(%arg0: i32) -> (i32, i32) {
    %c0_i32 = arith.constant 0 : i32
    %c0_i32_0 = arith.constant 0 : i32
    %c0_i32_1 = arith.constant 0 : i32
    return %c0_i32, %c0_i32_0 : i32, i32
  }
  func.func @transform_4(%arg0: i32) -> (i32, i32) {
    %c0_i32 = arith.constant 0 : i32
    %c0_i32_0 = arith.constant 0 : i32
    %c0_i32_1 = arith.constant 0 : i32
    return %c0_i32, %c0_i32_0 : i32, i32
  }
  func.func @transform_5(%arg0: i32) -> (i32, i32) {
    %c0_i32 = arith.constant 0 : i32
    %c0_i32_0 = arith.constant 0 : i32
    %c0_i32_1 = arith.constant 0 : i32
    return %c0_i32, %c0_i32_0 : i32, i32
  }
  func.func @transform_6(%arg0: i32) -> (i32, i32) {
    %c0_i32 = arith.constant 0 : i32
    %c0_i32_0 = arith.constant 0 : i32
    %c0_i32_1 = arith.constant 0 : i32
    return %c0_i32, %c0_i32_0 : i32, i32
  }
  func.func @transform_7(%arg0: i32) -> (i32, i32) {
    %c0_i32 = arith.constant 0 : i32
    %c0_i32_0 = arith.constant 0 : i32
    %c0_i32_1 = arith.constant 0 : i32
    return %c0_i32, %c0_i32_0 : i32, i32
  }
  func.func @transform_8(%arg0: i32) -> (i32, i32) {
    %c0_i32 = arith.constant 0 : i32
    %c0_i32_0 = arith.constant 0 : i32
    %c0_i32_1 = arith.constant 0 : i32
    return %c0_i32, %c0_i32_0 : i32, i32
  }
  func.func @transform_9(%arg0: i32) -> (i32, i32, i32) {
    %c0_i32 = arith.constant 0 : i32
    %c0_i32_0 = arith.constant 0 : i32
    %c0_i32_1 = arith.constant 0 : i32
    return %arg0, %c0_i32, %c0_i32_0 : i32, i32, i32
  }
}

</mosaic_0001>

<llo_original>
// kernel: tpu_custom_call.1
$region0: #{tpu_custom_call.1}
  #allocation0 [shape = 'u32[]', space=smem, size = 0x4, offset = 0x4, fixed_abs, tag = 'smem constant byte address 0x4 - core index']
  #allocation1 [shape = 'u32[144,128]{1,0:T(1,128)}', space=vmem, size = 0x12000, scoped, tag = 'internal scratch']
  %s0 = inlined_call_operand.vmem [shape: f32[2,4,256], index: 0, kind: input, shape index: {}]
  %s1 = inlined_call_operand.vmem [shape: f32[256,16], index: 1, kind: input, shape index: {}]
  %s2 = inlined_call_operand.vmem [shape: f32[256,16], index: 2, kind: input, shape index: {}]
  %s3 = inlined_call_operand.vmem [shape: f32[8,4], index: 3, kind: input, shape index: {}]
  %s4 = inlined_call_operand.vmem [shape: f32[8,1], index: 4, kind: input, shape index: {}]
  %s5 = inlined_call_operand.vmem [shape: f32[4,8], index: 5, kind: input, shape index: {}]
  %s6 = inlined_call_operand.vmem [shape: f32[4,1], index: 6, kind: input, shape index: {}]
  %s7 = inlined_call_operand.vmem [shape: f32[4,8], index: 7, kind: input, shape index: {}]
  %s8 = inlined_call_operand.vmem [shape: f32[4,1], index: 8, kind: input, shape index: {}]
  %s9 = inlined_call_operand.hbm [shape: f32[2,4,256], index: 9, kind: output, shape index: {}]
  %s10 = sld [smem:[#allocation0]]
  $region69: #{tpu_custom_call.1} parent=0
    _
  %s12 = ssub.s32 1, %s10
  %s13 = scalar_select 0, %s12, %s10
  $region1: #{tpu_custom_call.1} parent=0
    #allocation2 [shape = 'u8[8192]{0}', space=vmem, size = 0x2000, scoped, tag = 'output window, operand 0']
    #allocation3 [shape = 's32[2]{0}', space=sflag, size = 0x8, scoped, tag = 'scoped memory for tpu_custom_call.1']
    %14 = vsyncpa [#allocation3], 0
    %s15 = scalar_lea.sflag [#allocation3], 1
    %16 = vsyncpa %s15, 0
    loop: start=0, step=1, limit=4
    $region2: #{tpu_custom_call.1} parent=1 // loop_pre_header
      _
    $region3: #{tpu_custom_call.1} parent=1 // loop_header
      %s18 = sphi 0, %s22
      %p19 = scmp.ge.s32.totalorder %s18, 4
      %s28 = sphi 0, %s30
      %s31 = sphi 0, %s28
      %s32 = sphi 0, %s31
      %s48 = sphi 0, %s32
      %s52 = sphi 0, %s52
      %s54 = sphi 0, %s52
      %s55 = sphi 0, %s54
      %s69 = sphi 0, %s55
      %s73 = sphi 0, %s73
      %s75 = sphi 0, %s73
      %s76 = sphi 0, %s75
      %s90 = sphi 0, %s76
      %s94 = sphi 0, %s94
      %s96 = sphi 0, %s94
      %s97 = sphi 0, %s96
      %s111 = sphi 0, %s97
      %s115 = sphi 0, %s115
      %s117 = sphi 0, %s115
      %s118 = sphi 0, %s117
      %s132 = sphi 0, %s118
      %s136 = sphi 0, %s136
      %s138 = sphi 0, %s136
      %s139 = sphi 0, %s138
      %s153 = sphi 0, %s139
      %s157 = sphi 0, %s157
      %s159 = sphi 0, %s157
      %s160 = sphi 0, %s159
      %s174 = sphi 0, %s160
      %s178 = sphi 0, %s178
      %s180 = sphi 0, %s178
      %s181 = sphi 0, %s180
      %s195 = sphi 0, %s181
      %s199 = sphi 0, %s199
      %s201 = sphi 0, %s199
      %s202 = sphi 0, %s201
      %s216 = sphi 0, %s202
      %s222 = sphi 0, %s224
      %s225 = sphi 0, %s222
      %s226 = sphi 0, %s225
      %s242 = sphi 0, %s226
    $region4: #{tpu_custom_call.1} parent=1 // loop_header_branch
      %21 = sbr.rel (%p19) target = $region8
    $region5: #{tpu_custom_call.1} parent=1 // loop_body
      %s23 = ssub.s32 %s18, 1
      %s24 = ssub.s32 %s18, 2
      %s25 = sadd.s32 %s18, 1
      %s26 = ssub.s32 %s18, %s25
      %p27 = scmp.eq.s32.totalorder %s26, 0
      %s29 = sadd.s32 %s28, 1
      %s30 = scalar_select %p27, %s28, %s29
      %p33 = pneg %p27
      %p34 = scmp.eq.s32.totalorder %s18, 1
      %p35 = por %p33, %p34
      %p36 = scmp.ne.s32.totalorder %s28, %s31
      %p37 = scmp.eq.s32.totalorder %s18, 0
      %p38 = por %p36, %p37
      %p39 = scmp.ne.s32.totalorder %s28, %s31
      %p40 = scmp.eq.s32.totalorder %s23, 1
      %p41 = por %p39, %p40
      %p42 = scmp.ne.s32.totalorder %s31, %s32
      %p43 = scmp.eq.s32.totalorder %s23, 0
      %p44 = por %p42, %p43
      %p45 = scmp.ne.s32.totalorder %s31, %s32
      %p46 = scmp.eq.s32.totalorder %s24, 1
      %p47 = por %p45, %p46
      %p49 = scmp.ne.s32.totalorder %s32, %s48
      %p50 = scmp.eq.s32.totalorder %s24, 0
      %p51 = por %p49, %p50
      %s53 = sadd.s32 %s52, 1
      %p56 = scmp.eq.s32.totalorder %s18, 1
      %p57 = scmp.ne.s32.totalorder %s52, %s54
      %p58 = scmp.eq.s32.totalorder %s18, 0
      %p59 = por %p57, %p58
      %p60 = scmp.ne.s32.totalorder %s52, %s54
      %p61 = scmp.eq.s32.totalorder %s23, 1
      %p62 = por %p60, %p61
      %p63 = scmp.ne.s32.totalorder %s54, %s55
      %p64 = scmp.eq.s32.totalorder %s23, 0
      %p65 = por %p63, %p64
      %p66 = scmp.ne.s32.totalorder %s54, %s55
      %p67 = scmp.eq.s32.totalorder %s24, 1
      %p68 = por %p66, %p67
      %p70 = scmp.ne.s32.totalorder %s55, %s69
      %p71 = scmp.eq.s32.totalorder %s24, 0
      %p72 = por %p70, %p71
      %s74 = sadd.s32 %s73, 1
      %p77 = scmp.eq.s32.totalorder %s18, 1
      %p78 = scmp.ne.s32.totalorder %s73, %s75
      %p79 = scmp.eq.s32.totalorder %s18, 0
      %p80 = por %p78, %p79
      %p81 = scmp.ne.s32.totalorder %s73, %s75
      %p82 = scmp.eq.s32.totalorder %s23, 1
      %p83 = por %p81, %p82
      %p84 = scmp.ne.s32.totalorder %s75, %s76
      %p85 = scmp.eq.s32.totalorder %s23, 0
      %p86 = por %p84, %p85
      %p87 = scmp.ne.s32.totalorder %s75, %s76
      %p88 = scmp.eq.s32.totalorder %s24, 1
      %p89 = por %p87, %p88
      %p91 = scmp.ne.s32.totalorder %s76, %s90
      %p92 = scmp.eq.s32.totalorder %s24, 0
      %p93 = por %p91, %p92
      %s95 = sadd.s32 %s94, 1
      %p98 = scmp.eq.s32.totalorder %s18, 1
      %p99 = scmp.ne.s32.totalorder %s94, %s96
      %p100 = scmp.eq.s32.totalorder %s18, 0
      %p101 = por %p99, %p100
      %p102 = scmp.ne.s32.totalorder %s94, %s96
      %p103 = scmp.eq.s32.totalorder %s23, 1
      %p104 = por %p102, %p103
      %p105 = scmp.ne.s32.totalorder %s96, %s97
      %p106 = scmp.eq.s32.totalorder %s23, 0
      %p107 = por %p105, %p106
      %p108 = scmp.ne.s32.totalorder %s96, %s97
      %p109 = scmp.eq.s32.totalorder %s24, 1
      %p110 = por %p108, %p109
      %p112 = scmp.ne.s32.totalorder %s97, %s111
      %p113 = scmp.eq.s32.totalorder %s24, 0
      %p114 = por %p112, %p113
      %s116 = sadd.s32 %s115, 1
      %p119 = scmp.eq.s32.totalorder %s18, 1
      %p120 = scmp.ne.s32.totalorder %s115, %s117
      %p121 = scmp.eq.s32.totalorder %s18, 0
      %p122 = por %p120, %p121
      %p123 = scmp.ne.s32.totalorder %s115, %s117
      %p124 = scmp.eq.s32.totalorder %s23, 1
      %p125 = por %p123, %p124
      %p126 = scmp.ne.s32.totalorder %s117, %s118
      %p127 = scmp.eq.s32.totalorder %s23, 0
      %p128 = por %p126, %p127
      %p129 = scmp.ne.s32.totalorder %s117, %s118
      %p130 = scmp.eq.s32.totalorder %s24, 1
      %p131 = por %p129, %p130
      %p133 = scmp.ne.s32.totalorder %s118, %s132
      %p134 = scmp.eq.s32.totalorder %s24, 0
      %p135 = por %p133, %p134
      %s137 = sadd.s32 %s136, 1
      %p140 = scmp.eq.s32.totalorder %s18, 1
      %p141 = scmp.ne.s32.totalorder %s136, %s138
      %p142 = scmp.eq.s32.totalorder %s18, 0
      %p143 = por %p141, %p142
      %p144 = scmp.ne.s32.totalorder %s136, %s138
      %p145 = scmp.eq.s32.totalorder %s23, 1
      %p146 = por %p144, %p145
      %p147 = scmp.ne.s32.totalorder %s138, %s139
      %p148 = scmp.eq.s32.totalorder %s23, 0
      %p149 = por %p147, %p148
      %p150 = scmp.ne.s32.totalorder %s138, %s139
      %p151 = scmp.eq.s32.totalorder %s24, 1
      %p152 = por %p150, %p151
      %p154 = scmp.ne.s32.totalorder %s139, %s153
      %p155 = scmp.eq.s32.totalorder %s24, 0
      %p156 = por %p154, %p155
      %s158 = sadd.s32 %s157, 1
      %p161 = scmp.eq.s32.totalorder %s18, 1
      %p162 = scmp.ne.s32.totalorder %s157, %s159
      %p163 = scmp.eq.s32.totalorder %s18, 0
      %p164 = por %p162, %p163
      %p165 = scmp.ne.s32.totalorder %s157, %s159
      %p166 = scmp.eq.s32.totalorder %s23, 1
      %p167 = por %p165, %p166
      %p168 = scmp.ne.s32.totalorder %s159, %s160
      %p169 = scmp.eq.s32.totalorder %s23, 0
      %p170 = por %p168, %p169
      %p171 = scmp.ne.s32.totalorder %s159, %s160
      %p172 = scmp.eq.s32.totalorder %s24, 1
      %p173 = por %p171, %p172
      %p175 = scmp.ne.s32.totalorder %s160, %s174
      %p176 = scmp.eq.s32.totalorder %s24, 0
      %p177 = por %p175, %p176
      %s179 = sadd.s32 %s178, 1
      %p182 = scmp.eq.s32.totalorder %s18, 1
      %p183 = scmp.ne.s32.totalorder %s178, %s180
      %p184 = scmp.eq.s32.totalorder %s18, 0
      %p185 = por %p183, %p184
      %p186 = scmp.ne.s32.totalorder %s178, %s180
      %p187 = scmp.eq.s32.totalorder %s23, 1
      %p188 = por %p186, %p187
      %p189 = scmp.ne.s32.totalorder %s180, %s181
      %p190 = scmp.eq.s32.totalorder %s23, 0
      %p191 = por %p189, %p190
      %p192 = scmp.ne.s32.totalorder %s180, %s181
      %p193 = scmp.eq.s32.totalorder %s24, 1
      %p194 = por %p192, %p193
      %p196 = scmp.ne.s32.totalorder %s181, %s195
      %p197 = scmp.eq.s32.totalorder %s24, 0
      %p198 = por %p196, %p197
      %s200 = sadd.s32 %s199, 1
      %p203 = scmp.eq.s32.totalorder %s18, 1
      %p204 = scmp.ne.s32.totalorder %s199, %s201
      %p205 = scmp.eq.s32.totalorder %s18, 0
      %p206 = por %p204, %p205
      %p207 = scmp.ne.s32.totalorder %s199, %s201
      %p208 = scmp.eq.s32.totalorder %s23, 1
      %p209 = por %p207, %p208
      %p210 = scmp.ne.s32.totalorder %s201, %s202
      %p211 = scmp.eq.s32.totalorder %s23, 0
      %p212 = por %p210, %p211
      %p213 = scmp.ne.s32.totalorder %s201, %s202
      %p214 = scmp.eq.s32.totalorder %s24, 1
      %p215 = por %p213, %p214
      %p217 = scmp.ne.s32.totalorder %s202, %s216
      %p218 = scmp.eq.s32.totalorder %s24, 0
      %p219 = por %p217, %p218
      %s220 = ssub.s32 %s18, %s25
      %p221 = scmp.eq.s32.totalorder %s220, 0
      %s223 = sadd.s32 %s222, 1
      %s224 = scalar_select %p221, %s222, %s223
      %p227 = pneg %p221
      %p228 = scmp.eq.s32.totalorder %s18, 1
      %p229 = por %p227, %p228
      %p230 = scmp.ne.s32.totalorder %s222, %s225
      %p231 = scmp.eq.s32.totalorder %s18, 0
      %p232 = por %p230, %p231
      %p233 = scmp.ne.s32.totalorder %s222, %s225
      %p234 = scmp.eq.s32.totalorder %s23, 1
      %p235 = por %p233, %p234
      %p236 = scmp.ne.s32.totalorder %s225, %s226
      %p237 = scmp.eq.s32.totalorder %s23, 0
      %p238 = por %p236, %p237
      %p239 = scmp.ne.s32.totalorder %s225, %s226
      %p240 = scmp.eq.s32.totalorder %s24, 1
      %p241 = por %p239, %p240
      %p243 = scmp.ne.s32.totalorder %s226, %s242
      %p244 = scmp.eq.s32.totalorder %s24, 0
      %p245 = por %p243, %p244
      %p246 = scmp.le.s32.totalorder 1, %s18
      %p247 = scmp.lt.s32.totalorder %s18, 3
      %p248 = pnand %p246, %p247
      %p249 = pneg %p248
      // Predicated region
      $region9: #{tpu_custom_call.1} parent=5 // pred_check
        _
      $region10: #{tpu_custom_call.1} parent=5 // pred_check_branch
        %251 = sbr.rel (%p248) target = $region12
      $region11: #{tpu_custom_call.1} parent=5 // pred_region
        %s252 = ssub.s32 %s18, 1
        // Predicated region
        $region13: #{tpu_custom_call.1} parent=11 // pred_check
          %p253 = pneg %p65
        $region14: #{tpu_custom_call.1} parent=11 // pred_check_branch
          %255 = sbr.rel (%p253) target = $region16
        $region15: #{tpu_custom_call.1} parent=11 // pred_region
          _
        $region16: #{tpu_custom_call.1} parent=11 // pred_fallthru
          _
        // Predicated region
        $region17: #{tpu_custom_call.1} parent=11 // pred_check
          %p256 = pneg %p86
        $region18: #{tpu_custom_call.1} parent=11 // pred_check_branch
          %258 = sbr.rel (%p256) target = $region20
        $region19: #{tpu_custom_call.1} parent=11 // pred_region
          _
        $region20: #{tpu_custom_call.1} parent=11 // pred_fallthru
          _
        // Predicated region
        $region21: #{tpu_custom_call.1} parent=11 // pred_check
          %p259 = pneg %p107
        $region22: #{tpu_custom_call.1} parent=11 // pred_check_branch
          %261 = sbr.rel (%p259) target = $region24
        $region23: #{tpu_custom_call.1} parent=11 // pred_region
          _
        $region24: #{tpu_custom_call.1} parent=11 // pred_fallthru
          _
        // Predicated region
        $region25: #{tpu_custom_call.1} parent=11 // pred_check
          %p262 = pneg %p128
        $region26: #{tpu_custom_call.1} parent=11 // pred_check_branch
          %264 = sbr.rel (%p262) target = $region28
        $region27: #{tpu_custom_call.1} parent=11 // pred_region
          _
        $region28: #{tpu_custom_call.1} parent=11 // pred_fallthru
          _
        // Predicated region
        $region29: #{tpu_custom_call.1} parent=11 // pred_check
          %p265 = pneg %p149
        $region30: #{tpu_custom_call.1} parent=11 // pred_check_branch
          %267 = sbr.rel (%p265) target = $region32
        $region31: #{tpu_custom_call.1} parent=11 // pred_region
          _
        $region32: #{tpu_custom_call.1} parent=11 // pred_fallthru
          _
        // Predicated region
        $region33: #{tpu_custom_call.1} parent=11 // pred_check
          %p268 = pneg %p170
        $region34: #{tpu_custom_call.1} parent=11 // pred_check_branch
          %270 = sbr.rel (%p268) target = $region36
        $region35: #{tpu_custom_call.1} parent=11 // pred_region
          _
        $region36: #{tpu_custom_call.1} parent=11 // pred_fallthru
          _
        // Predicated region
        $region37: #{tpu_custom_call.1} parent=11 // pred_check
          %p271 = pneg %p191
        $region38: #{tpu_custom_call.1} parent=11 // pred_check_branch
          %273 = sbr.rel (%p271) target = $region40
        $region39: #{tpu_custom_call.1} parent=11 // pred_region
          _
        $region40: #{tpu_custom_call.1} parent=11 // pred_fallthru
          _
        // Predicated region
        $region41: #{tpu_custom_call.1} parent=11 // pred_check
          %p274 = pneg %p212
        $region42: #{tpu_custom_call.1} parent=11 // pred_check_branch
          %276 = sbr.rel (%p274) target = $region44
        $region43: #{tpu_custom_call.1} parent=11 // pred_region
          _
        $region44: #{tpu_custom_call.1} parent=11 // pred_fallthru
          _
      $region12: #{tpu_custom_call.1} parent=5 // pred_fallthru
        _
      %p277 = scmp.lt.s32.totalorder %s18, 2
      // Predicated region
      $region45: #{tpu_custom_call.1} parent=5 // pred_check
        %p278 = pneg %p277
      $region46: #{tpu_custom_call.1} parent=5 // pred_check_branch
        %280 = sbr.rel (%p278) target = $region48
      $region47: #{tpu_custom_call.1} parent=5 // pred_region
        // Predicated region
        $region49: #{tpu_custom_call.1} parent=47 // pred_check
          %p281 = pneg %p38
        $region50: #{tpu_custom_call.1} parent=47 // pred_check_branch
          %283 = sbr.rel (%p281) target = $region52
        $region51: #{tpu_custom_call.1} parent=47 // pred_region
          %p284 = scmp.lt.s32.totalorder %s18, 1
          %s285 = scalar_select %p284, %s18, 1
          %s286 = smul.addr %s285, 2
          %s287 = smul.addr %s286, 4
          %s288 = scalar_lea.vmem %s0, %s287
        $region52: #{tpu_custom_call.1} parent=47 // pred_fallthru
          _
      $region48: #{tpu_custom_call.1} parent=5 // pred_fallthru
        _
      %p289 = scmp.le.s32.totalorder 1, %s18
      %p290 = scmp.lt.s32.totalorder %s18, 3
      %p291 = pnand %p289, %p290
      %p292 = pneg %p291
      // Predicated region
      $region53: #{tpu_custom_call.1} parent=5 // pred_check
        _
      $region54: #{tpu_custom_call.1} parent=5 // pred_check_branch
        %294 = sbr.rel (%p291) target = $region56
      $region55: #{tpu_custom_call.1} parent=5 // pred_region
        %s295 = ssub.s32 %s18, 1
        %p296 = scmp.lt.s32.totalorder %s23, 1
        %s297 = scalar_select %p296, %s23, 1
        %s298 = smul.addr %s297, 2
        %s299 = smul.addr %s298, 4
        %s300 = scalar_lea.vmem %s0, %s299
        %p301 = pneg %p44
        %p302 = pneg %p41
        %p303 = pneg %p65
        %p304 = pneg %p62
        %p305 = pneg %p86
        %p306 = pneg %p83
        %p307 = pneg %p107
        %p308 = pneg %p104
        %p309 = pneg %p128
        %p310 = pneg %p125
        %p311 = pneg %p149
        %p312 = pneg %p146
        %p313 = pneg %p170
        %p314 = pneg %p167
        %p315 = pneg %p191
        %p316 = pneg %p188
        %p317 = pneg %p212
        %p318 = pneg %p209
        %p319 = pneg %p238
        %p320 = pneg %p235
        %s321 = sand.u32 %s225, 1
        %s322 = scalar_lea.sflag [#allocation3], %s321
        %s323 = sand.u32 %s225, 1
        %s324 = smul.addr %s323, 8
        %s325 = scalar_lea.vmem [#allocation2], %s324
        %p326 = scmp.lt.s32.totalorder %s23, 1
        %s327 = scalar_select %p326, %s23, 1
        %s328 = smul.addr %s327, 2
        %s329 = smul.addr %s328, 4
        %s330 = scalar_lea.vmem %s0, %s329
        %v331 = vld [vmem:[%s1] sm:$0xff]
        %v332 = vld [vmem:[%s1 + $0x8] sm:$0xff]
        %v333 = vld [vmem:[%s1 + $0x10] sm:$0xff]
        %v334 = vld [vmem:[%s1 + $0x18] sm:$0xff]
        %v335 = vld [vmem:[%s1 + $0x20] sm:$0xff]
        %v336 = vld [vmem:[%s1 + $0x28] sm:$0xff]
        %v337 = vld [vmem:[%s1 + $0x30] sm:$0xff]
        %v338 = vld [vmem:[%s1 + $0x38] sm:$0xff]
        %v339 = vld [vmem:[%s1 + $0x40] sm:$0xff]
        %v340 = vld [vmem:[%s1 + $0x48] sm:$0xff]
        %v341 = vld [vmem:[%s1 + $0x50] sm:$0xff]
        %v342 = vld [vmem:[%s1 + $0x58] sm:$0xff]
        %v343 = vld [vmem:[%s1 + $0x60] sm:$0xff]
        %v344 = vld [vmem:[%s1 + $0x68] sm:$0xff]
        %v345 = vld [vmem:[%s1 + $0x70] sm:$0xff]
        %v346 = vld [vmem:[%s1 + $0x78] sm:$0xff]
        %v347 = vld [vmem:[%s1 + $0x80] sm:$0xff]
        %v348 = vld [vmem:[%s1 + $0x88] sm:$0xff]
        %v349 = vld [vmem:[%s1 + $0x90] sm:$0xff]
        %v350 = vld [vmem:[%s1 + $0x98] sm:$0xff]
        %v351 = vld [vmem:[%s1 + $0xa0] sm:$0xff]
        %v352 = vld [vmem:[%s1 + $0xa8] sm:$0xff]
        %v353 = vld [vmem:[%s1 + $0xb0] sm:$0xff]
        %v354 = vld [vmem:[%s1 + $0xb8] sm:$0xff]
        %v355 = vld [vmem:[%s1 + $0xc0] sm:$0xff]
        %v356 = vld [vmem:[%s1 + $0xc8] sm:$0xff]
        %v357 = vld [vmem:[%s1 + $0xd0] sm:$0xff]
        %v358 = vld [vmem:[%s1 + $0xd8] sm:$0xff]
        %v359 = vld [vmem:[%s1 + $0xe0] sm:$0xff]
        %v360 = vld [vmem:[%s1 + $0xe8] sm:$0xff]
        %v361 = vld [vmem:[%s1 + $0xf0] sm:$0xff]
        %v362 = vld [vmem:[%s1 + $0xf8] sm:$0xff]
        %v363 = vld [vmem:[%s2] sm:$0xff]
        %v364 = vld [vmem:[%s2 + $0x8] sm:$0xff]
        %v365 = vld [vmem:[%s2 + $0x10] sm:$0xff]
        %v366 = vld [vmem:[%s2 + $0x18] sm:$0xff]
        %v367 = vld [vmem:[%s2 + $0x20] sm:$0xff]
        %v368 = vld [vmem:[%s2 + $0x28] sm:$0xff]
        %v369 = vld [vmem:[%s2 + $0x30] sm:$0xff]
        %v370 = vld [vmem:[%s2 + $0x38] sm:$0xff]
        %v371 = vld [vmem:[%s2 + $0x40] sm:$0xff]
        %v372 = vld [vmem:[%s2 + $0x48] sm:$0xff]
        %v373 = vld [vmem:[%s2 + $0x50] sm:$0xff]
        %v374 = vld [vmem:[%s2 + $0x58] sm:$0xff]
        %v375 = vld [vmem:[%s2 + $0x60] sm:$0xff]
        %v376 = vld [vmem:[%s2 + $0x68] sm:$0xff]
        %v377 = vld [vmem:[%s2 + $0x70] sm:$0xff]
        %v378 = vld [vmem:[%s2 + $0x78] sm:$0xff]
        %v379 = vld [vmem:[%s2 + $0x80] sm:$0xff]
        %v380 = vld [vmem:[%s2 + $0x88] sm:$0xff]
        %v381 = vld [vmem:[%s2 + $0x90] sm:$0xff]
        %v382 = vld [vmem:[%s2 + $0x98] sm:$0xff]
        %v383 = vld [vmem:[%s2 + $0xa0] sm:$0xff]
        %v384 = vld [vmem:[%s2 + $0xa8] sm:$0xff]
        %v385 = vld [vmem:[%s2 + $0xb0] sm:$0xff]
        %v386 = vld [vmem:[%s2 + $0xb8] sm:$0xff]
        %v387 = vld [vmem:[%s2 + $0xc0] sm:$0xff]
        %v388 = vld [vmem:[%s2 + $0xc8] sm:$0xff]
        %v389 = vld [vmem:[%s2 + $0xd0] sm:$0xff]
        %v390 = vld [vmem:[%s2 + $0xd8] sm:$0xff]
        %v391 = vld [vmem:[%s2 + $0xe0] sm:$0xff]
        %v392 = vld [vmem:[%s2 + $0xe8] sm:$0xff]
        %v393 = vld [vmem:[%s2 + $0xf0] sm:$0xff]
        %v394 = vld [vmem:[%s2 + $0xf8] sm:$0xff]
        %v395 = vld [vmem:[%s3] sm:$0xff]
        %v396 = vld [vmem:[%s4] sm:$0xff]
        %v397 = vld [vmem:[%s5] sm:$0xf]
        %v398 = vld [vmem:[%s6] sm:$0xf]
        %v399 = vld [vmem:[%s7] sm:$0xf]
        %v400 = vld [vmem:[%s8] sm:$0xf]
        %v401 = vld [vmem:[%s330] sm:$0xff]
        %v403 = vcombine.high %v401, %v401
        %405 = vmatprep.subr.mxu0 0.0
        %406 = vmatpush1.msra.mxu0 %v346
        %407 = vmatprep.subr.mxu0 0.0
        %408 = vmatpush1.msra.mxu0 %v345
        %409 = vmatprep.subr.mxu0 0.0
        %410 = vmatpush1.msra.mxu0 %v344
        %411 = vmatprep.subr.mxu0 0.0
        %412 = vmatpush1.msra.mxu0 %v343
        %413 = vmatprep.subr.mxu0 0.0
        %414 = vmatpush1.msra.mxu0 %v342
        %415 = vmatprep.subr.mxu0 0.0
        %416 = vmatpush1.msra.mxu0 %v341
        %417 = vmatprep.subr.mxu0 0.0
        %418 = vmatpush1.msra.mxu0 %v340
        %419 = vmatprep.subr.mxu0 0.0
        %420 = vmatpush1.msra.mxu0 %v339
        %421 = vmatprep.subr.mxu0 0.0
        %422 = vmatpush1.msra.mxu0 %v338
        %423 = vmatprep.subr.mxu0 0.0
        %424 = vmatpush1.msra.mxu0 %v337
        %425 = vmatprep.subr.mxu0 0.0
        %426 = vmatpush1.msra.mxu0 %v336
        %427 = vmatprep.subr.mxu0 0.0
        %428 = vmatpush1.msra.mxu0 %v335
        %429 = vmatprep.subr.mxu0 0.0
        %430 = vmatpush1.msra.mxu0 %v334
        %431 = vmatprep.subr.mxu0 0.0
        %432 = vmatpush1.msra.mxu0 %v333
        %433 = vmatprep.subr.mxu0 0.0
        %434 = vmatpush1.msra.mxu0 %v332
        %435 = vmatprep.subr.mxu0 0.0
        %436 = vmatpush1.msra.mxu0 %v331
        %437 = vmatprep.subr.mxu0 0.0
        %438 = vmatpush2.msra.mxu0 %v362
        %439 = vmatprep.subr.mxu0 0.0
        %440 = vmatpush2.msra.mxu0 %v361
        %441 = vmatprep.subr.mxu0 0.0
        %442 = vmatpush2.msra.mxu0 %v360
        %443 = vmatprep.subr.mxu0 0.0
        %444 = vmatpush2.msra.mxu0 %v359
        %445 = vmatprep.subr.mxu0 0.0
        %446 = vmatpush2.msra.mxu0 %v358
        %447 = vmatprep.subr.mxu0 0.0
        %448 = vmatpush2.msra.mxu0 %v357
        %449 = vmatprep.subr.mxu0 0.0
        %450 = vmatpush2.msra.mxu0 %v356
        %451 = vmatprep.subr.mxu0 0.0
        %452 = vmatpush2.msra.mxu0 %v355
        %453 = vmatprep.subr.mxu0 0.0
        %454 = vmatpush2.msra.mxu0 %v354
        %455 = vmatprep.subr.mxu0 0.0
        %456 = vmatpush2.msra.mxu0 %v353
        %457 = vmatprep.subr.mxu0 0.0
        %458 = vmatpush2.msra.mxu0 %v352
        %459 = vmatprep.subr.mxu0 0.0
        %460 = vmatpush2.msra.mxu0 %v351
        %461 = vmatprep.subr.mxu0 0.0
        %462 = vmatpush2.msra.mxu0 %v350
        %463 = vmatprep.subr.mxu0 0.0
        %464 = vmatpush2.msra.mxu0 %v349
        %465 = vmatprep.subr.mxu0 0.0
        %466 = vmatpush2.msra.mxu0 %v348
        %467 = vmatprep.subr.mxu0 0.0
        %468 = vmatpush2.msra.mxu0 %v347
        %469 = vmatprep.mubr.f32.mxu0 %v403
        %470 = vmatmul.mubr.f32.gmra.mxu0 %v401
        %v471 = vpop.f32.mrf.mxu0
        %v472 = vadd.f32 0.0, %v471
        %v473 = vpop.f32.mrf.mxu0
        %474 = vdwg.mxu0
        %475 = vmatprep.subr.mxu0 0.0
        %476 = vmatpush1.msra.mxu0 %v378
        %477 = vmatprep.subr.mxu0 0.0
        %478 = vmatpush1.msra.mxu0 %v377
        %479 = vmatprep.subr.mxu0 0.0
        %480 = vmatpush1.msra.mxu0 %v376
        %481 = vmatprep.subr.mxu0 0.0
        %482 = vmatpush1.msra.mxu0 %v375
        %483 = vmatprep.subr.mxu0 0.0
        %484 = vmatpush1.msra.mxu0 %v374
        %485 = vmatprep.subr.mxu0 0.0
        %486 = vmatpush1.msra.mxu0 %v373
        %487 = vmatprep.subr.mxu0 0.0
        %488 = vmatpush1.msra.mxu0 %v372
        %489 = vmatprep.subr.mxu0 0.0
        %490 = vmatpush1.msra.mxu0 %v371
        %491 = vmatprep.subr.mxu0 0.0
        %492 = vmatpush1.msra.mxu0 %v370
        %493 = vmatprep.subr.mxu0 0.0
        %494 = vmatpush1.msra.mxu0 %v369
        %495 = vmatprep.subr.mxu0 0.0
        %496 = vmatpush1.msra.mxu0 %v368
        %497 = vmatprep.subr.mxu0 0.0
        %498 = vmatpush1.msra.mxu0 %v367
        %499 = vmatprep.subr.mxu0 0.0
        %500 = vmatpush1.msra.mxu0 %v366
        %501 = vmatprep.subr.mxu0 0.0
        %502 = vmatpush1.msra.mxu0 %v365
        %503 = vmatprep.subr.mxu0 0.0
        %504 = vmatpush1.msra.mxu0 %v364
        %505 = vmatprep.subr.mxu0 0.0
        %506 = vmatpush1.msra.mxu0 %v363
        %507 = vmatprep.subr.mxu0 0.0
        %508 = vmatpush2.msra.mxu0 %v394
        %509 = vmatprep.subr.mxu0 0.0
        %510 = vmatpush2.msra.mxu0 %v393
        %511 = vmatprep.subr.mxu0 0.0
        %512 = vmatpush2.msra.mxu0 %v392
        %513 = vmatprep.subr.mxu0 0.0
        %514 = vmatpush2.msra.mxu0 %v391
        %515 = vmatprep.subr.mxu0 0.0
        %516 = vmatpush2.msra.mxu0 %v390
        %517 = vmatprep.subr.mxu0 0.0
        %518 = vmatpush2.msra.mxu0 %v389
        %519 = vmatprep.subr.mxu0 0.0
        %520 = vmatpush2.msra.mxu0 %v388
        %521 = vmatprep.subr.mxu0 0.0
        %522 = vmatpush2.msra.mxu0 %v387
        %523 = vmatprep.subr.mxu0 0.0
        %524 = vmatpush2.msra.mxu0 %v386
        %525 = vmatprep.subr.mxu0 0.0
        %526 = vmatpush2.msra.mxu0 %v385
        %527 = vmatprep.subr.mxu0 0.0
        %528 = vmatpush2.msra.mxu0 %v384
        %529 = vmatprep.subr.mxu0 0.0
        %530 = vmatpush2.msra.mxu0 %v383
        %531 = vmatprep.subr.mxu0 0.0
        %532 = vmatpush2.msra.mxu0 %v382
        %533 = vmatprep.subr.mxu0 0.0
        %534 = vmatpush2.msra.mxu0 %v381
        %535 = vmatprep.subr.mxu0 0.0
        %536 = vmatpush2.msra.mxu0 %v380
        %537 = vmatprep.subr.mxu0 0.0
        %538 = vmatpush2.msra.mxu0 %v379
        %539 = vmatprep.mubr.f32.mxu0 %v403
        %540 = vmatmul.mubr.f32.gmra.mxu0 %v401
        %v541 = vpop.f32.mrf.mxu0
        %v542 = vadd.f32 0.0, %v541
        %v543 = vpop.f32.mrf.mxu0
        %544 = vdwg.mxu0
        %546 = vset.pattern.permute.xlu0 0
        %547 = vperm.xlu0 %546, %v396
        %v548 = vpop.permute.xlu0 %547
        %vm550 = vcmask 31744
        %v552 = vsel %vm550, %v395, 0
        %vm554 = vcmask 1043456
        %v556 = vsel %vm554, %v472, 0
        %558 = vmatprep.subr.mxu0 0.0
        %559 = vmatpush1.msra.mxu0 0.0
        %560 = vmatprep.subr.mxu0 0.0
        %561 = vmatpush1.msra.mxu0 0.0
        %562 = vmatprep.subr.mxu0 0.0
        %563 = vmatpush1.msra.mxu0 0.0
        %564 = vmatprep.subr.mxu0 0.0
        %565 = vmatpush1.msra.mxu0 0.0
        %566 = vmatprep.subr.mxu0 0.0
        %567 = vmatpush1.msra.mxu0 0.0
        %568 = vmatprep.subr.mxu0 0.0
        %569 = vmatpush1.msra.mxu0 0.0
        %570 = vmatprep.subr.mxu0 0.0
        %571 = vmatpush1.msra.mxu0 0.0
        %572 = vmatprep.subr.mxu0 0.0
        %573 = vmatpush1.msra.mxu0 0.0
        %574 = vmatprep.subr.mxu0 0.0
        %575 = vmatpush1.msra.mxu0 0.0
        %576 = vmatprep.subr.mxu0 0.0
        %577 = vmatpush1.msra.mxu0 0.0
        %578 = vmatprep.subr.mxu0 0.0
        %579 = vmatpush1.msra.mxu0 0.0
        %580 = vmatprep.subr.mxu0 0.0
        %581 = vmatpush1.msra.mxu0 0.0
        %582 = vmatprep.subr.mxu0 0.0
        %583 = vmatpush1.msra.mxu0 0.0
        %584 = vmatprep.subr.mxu0 0.0
        %585 = vmatpush1.msra.mxu0 0.0
        %586 = vmatprep.subr.mxu0 0.0
        %587 = vmatpush1.msra.mxu0 0.0
        %588 = vmatprep.subr.mxu0 0.0
        %589 = vmatpush1.msra.mxu0 %v556
        %590 = vmatprep.subr.mxu0 0.0
        %591 = vmatpush2.msra.mxu0 0.0
        %592 = vmatprep.subr.mxu0 0.0
        %593 = vmatpush2.msra.mxu0 0.0
        %594 = vmatprep.subr.mxu0 0.0
        %595 = vmatpush2.msra.mxu0 0.0
        %596 = vmatprep.subr.mxu0 0.0
        %597 = vmatpush2.msra.mxu0 0.0
        %598 = vmatprep.subr.mxu0 0.0
        %599 = vmatpush2.msra.mxu0 0.0
        %600 = vmatprep.subr.mxu0 0.0
        %601 = vmatpush2.msra.mxu0 0.0
        %602 = vmatprep.subr.mxu0 0.0
        %603 = vmatpush2.msra.mxu0 0.0
        %604 = vmatprep.subr.mxu0 0.0
        %605 = vmatpush2.msra.mxu0 0.0
        %606 = vmatprep.subr.mxu0 0.0
        %607 = vmatpush2.msra.mxu0 0.0
        %608 = vmatprep.subr.mxu0 0.0
        %609 = vmatpush2.msra.mxu0 0.0
        %610 = vmatprep.subr.mxu0 0.0
        %611 = vmatpush2.msra.mxu0 0.0
        %612 = vmatprep.subr.mxu0 0.0
        %613 = vmatpush2.msra.mxu0 0.0
        %614 = vmatprep.subr.mxu0 0.0
        %615 = vmatpush2.msra.mxu0 0.0
        %616 = vmatprep.subr.mxu0 0.0
        %617 = vmatpush2.msra.mxu0 0.0
        %618 = vmatprep.subr.mxu0 0.0
        %619 = vmatpush2.msra.mxu0 0.0
        %620 = vmatprep.subr.mxu0 0.0
        %621 = vmatpush2.msra.mxu0 0.0
        %622 = vmatprep.mubr.f32.mxu0 0.0
        %623 = vmatmul.mubr.f32.gmra.mxu0 %v552
        %v624 = vpop.f32.mrf.mxu0
        %v625 = vadd.f32 %v548, %v624
        %v626 = vpop.f32.mrf.mxu0
        %627 = vdwg.mxu0
        %v628 = vadd.f32 %v625, 3.0
        %v629 = vmax.f32 %v628, 0.0
        %v630 = vmin.f32 %v629, 6.0
        %v631 = vmul.f32 %v625, %v630
        %v632 = vmul.f32 %v631, 0.16666667
        %v634 = vsel %vm554, %v542, 0
        %636 = vmatprep.subr.mxu0 0.0
        %637 = vmatpush1.msra.mxu0 0.0
        %638 = vmatprep.subr.mxu0 0.0
        %639 = vmatpush1.msra.mxu0 0.0
        %640 = vmatprep.subr.mxu0 0.0
        %641 = vmatpush1.msra.mxu0 0.0
        %642 = vmatprep.subr.mxu0 0.0
        %643 = vmatpush1.msra.mxu0 0.0
        %644 = vmatprep.subr.mxu0 0.0
        %645 = vmatpush1.msra.mxu0 0.0
        %646 = vmatprep.subr.mxu0 0.0
        %647 = vmatpush1.msra.mxu0 0.0
        %648 = vmatprep.subr.mxu0 0.0
        %649 = vmatpush1.msra.mxu0 0.0
        %650 = vmatprep.subr.mxu0 0.0
        %651 = vmatpush1.msra.mxu0 0.0
        %652 = vmatprep.subr.mxu0 0.0
        %653 = vmatpush1.msra.mxu0 0.0
        %654 = vmatprep.subr.mxu0 0.0
        %655 = vmatpush1.msra.mxu0 0.0
        %656 = vmatprep.subr.mxu0 0.0
        %657 = vmatpush1.msra.mxu0 0.0
        %658 = vmatprep.subr.mxu0 0.0
        %659 = vmatpush1.msra.mxu0 0.0
        %660 = vmatprep.subr.mxu0 0.0
        %661 = vmatpush1.msra.mxu0 0.0
        %662 = vmatprep.subr.mxu0 0.0
        %663 = vmatpush1.msra.mxu0 0.0
        %664 = vmatprep.subr.mxu0 0.0
        %665 = vmatpush1.msra.mxu0 0.0
        %666 = vmatprep.subr.mxu0 0.0
        %667 = vmatpush1.msra.mxu0 %v634
        %668 = vmatprep.subr.mxu0 0.0
        %669 = vmatpush2.msra.mxu0 0.0
        %670 = vmatprep.subr.mxu0 0.0
        %671 = vmatpush2.msra.mxu0 0.0
        %672 = vmatprep.subr.mxu0 0.0
        %673 = vmatpush2.msra.mxu0 0.0
        %674 = vmatprep.subr.mxu0 0.0
        %675 = vmatpush2.msra.mxu0 0.0
        %676 = vmatprep.subr.mxu0 0.0
        %677 = vmatpush2.msra.mxu0 0.0
        %678 = vmatprep.subr.mxu0 0.0
        %679 = vmatpush2.msra.mxu0 0.0
        %680 = vmatprep.subr.mxu0 0.0
        %681 = vmatpush2.msra.mxu0 0.0
        %682 = vmatprep.subr.mxu0 0.0
        %683 = vmatpush2.msra.mxu0 0.0
        %684 = vmatprep.subr.mxu0 0.0
        %685 = vmatpush2.msra.mxu0 0.0
        %686 = vmatprep.subr.mxu0 0.0
        %687 = vmatpush2.msra.mxu0 0.0
        %688 = vmatprep.subr.mxu0 0.0
        %689 = vmatpush2.msra.mxu0 0.0
        %690 = vmatprep.subr.mxu0 0.0
        %691 = vmatpush2.msra.mxu0 0.0
        %692 = vmatprep.subr.mxu0 0.0
        %693 = vmatpush2.msra.mxu0 0.0
        %694 = vmatprep.subr.mxu0 0.0
        %695 = vmatpush2.msra.mxu0 0.0
        %696 = vmatprep.subr.mxu0 0.0
        %697 = vmatpush2.msra.mxu0 0.0
        %698 = vmatprep.subr.mxu0 0.0
        %699 = vmatpush2.msra.mxu0 0.0
        %700 = vmatprep.mubr.f32.mxu0 0.0
        %701 = vmatmul.mubr.f32.gmra.mxu0 %v552
        %v702 = vpop.f32.mrf.mxu0
        %v703 = vadd.f32 %v548, %v702
        %v704 = vpop.f32.mrf.mxu0
        %705 = vdwg.mxu0
        %v706 = vadd.f32 %v703, 3.0
        %v707 = vmax.f32 %v706, 0.0
        %v708 = vmin.f32 %v707, 6.0
        %v709 = vmul.f32 %v703, %v708
        %v710 = vmul.f32 %v709, 0.16666667
        %712 = vset.pattern.permute.xlu0 0
        %713 = vperm.xlu0 %712, %v398
        %v714 = vpop.permute.xlu0 %713
        %vm716 = vcmask 64512
        %v718 = vsel %vm716, %v397, 0
        %720 = vmatprep.subr.mxu0 0.0
        %721 = vmatpush1.msra.mxu0 0.0
        %722 = vmatprep.subr.mxu0 0.0
        %723 = vmatpush1.msra.mxu0 0.0
        %724 = vmatprep.subr.mxu0 0.0
        %725 = vmatpush1.msra.mxu0 0.0
        %726 = vmatprep.subr.mxu0 0.0
        %727 = vmatpush1.msra.mxu0 0.0
        %728 = vmatprep.subr.mxu0 0.0
        %729 = vmatpush1.msra.mxu0 0.0
        %730 = vmatprep.subr.mxu0 0.0
        %731 = vmatpush1.msra.mxu0 0.0
        %732 = vmatprep.subr.mxu0 0.0
        %733 = vmatpush1.msra.mxu0 0.0
        %734 = vmatprep.subr.mxu0 0.0
        %735 = vmatpush1.msra.mxu0 0.0
        %736 = vmatprep.subr.mxu0 0.0
        %737 = vmatpush1.msra.mxu0 0.0
        %738 = vmatprep.subr.mxu0 0.0
        %739 = vmatpush1.msra.mxu0 0.0
        %740 = vmatprep.subr.mxu0 0.0
        %741 = vmatpush1.msra.mxu0 0.0
        %742 = vmatprep.subr.mxu0 0.0
        %743 = vmatpush1.msra.mxu0 0.0
        %744 = vmatprep.subr.mxu0 0.0
        %745 = vmatpush1.msra.mxu0 0.0
        %746 = vmatprep.subr.mxu0 0.0
        %747 = vmatpush1.msra.mxu0 0.0
        %748 = vmatprep.subr.mxu0 0.0
        %749 = vmatpush1.msra.mxu0 0.0
        %750 = vmatprep.subr.mxu0 0.0
        %751 = vmatpush1.msra.mxu0 %v632
        %752 = vmatprep.subr.mxu0 0.0
        %753 = vmatpush2.msra.mxu0 0.0
        %754 = vmatprep.subr.mxu0 0.0
        %755 = vmatpush2.msra.mxu0 0.0
        %756 = vmatprep.subr.mxu0 0.0
        %757 = vmatpush2.msra.mxu0 0.0
        %758 = vmatprep.subr.mxu0 0.0
        %759 = vmatpush2.msra.mxu0 0.0
        %760 = vmatprep.subr.mxu0 0.0
        %761 = vmatpush2.msra.mxu0 0.0
        %762 = vmatprep.subr.mxu0 0.0
        %763 = vmatpush2.msra.mxu0 0.0
        %764 = vmatprep.subr.mxu0 0.0
        %765 = vmatpush2.msra.mxu0 0.0
        %766 = vmatprep.subr.mxu0 0.0
        %767 = vmatpush2.msra.mxu0 0.0
        %768 = vmatprep.subr.mxu0 0.0
        %769 = vmatpush2.msra.mxu0 0.0
        %770 = vmatprep.subr.mxu0 0.0
        %771 = vmatpush2.msra.mxu0 0.0
        %772 = vmatprep.subr.mxu0 0.0
        %773 = vmatpush2.msra.mxu0 0.0
        %774 = vmatprep.subr.mxu0 0.0
        %775 = vmatpush2.msra.mxu0 0.0
        %776 = vmatprep.subr.mxu0 0.0
        %777 = vmatpush2.msra.mxu0 0.0
        %778 = vmatprep.subr.mxu0 0.0
        %779 = vmatpush2.msra.mxu0 0.0
        %780 = vmatprep.subr.mxu0 0.0
        %781 = vmatpush2.msra.mxu0 0.0
        %782 = vmatprep.subr.mxu0 0.0
        %783 = vmatpush2.msra.mxu0 0.0
        %784 = vmatprep.mubr.f32.mxu0 0.0
        %785 = vmatmul.mubr.f32.gmra.mxu0 %v718
        %v786 = vpop.f32.mrf.mxu0
        %v787 = vadd.f32 %v714, %v786
        %v788 = vpop.f32.mrf.mxu0
        %789 = vdwg.mxu0
        %v790 = vxor.u32 %v787, 2147483648
        %v791 = vmul.f32 %v790, 1.442695
        %v792 = vpow.pop %v791
        %v793 = vadd.f32 %v792, 1.0
        %v794 = vrcp.pop %v793
        %v795 = vmul.f32 1.0, %v794
        %797 = vset.pattern.permute.xlu0 0
        %798 = vperm.xlu0 %797, %v400
        %v799 = vpop.permute.xlu0 %798
        %v802 = vsel %vm716, %v399, 0
        %804 = vmatprep.subr.mxu0 0.0
        %805 = vmatpush1.msra.mxu0 0.0
        %806 = vmatprep.subr.mxu0 0.0
        %807 = vmatpush1.msra.mxu0 0.0
        %808 = vmatprep.subr.mxu0 0.0
        %809 = vmatpush1.msra.mxu0 0.0
        %810 = vmatprep.subr.mxu0 0.0
        %811 = vmatpush1.msra.mxu0 0.0
        %812 = vmatprep.subr.mxu0 0.0
        %813 = vmatpush1.msra.mxu0 0.0
        %814 = vmatprep.subr.mxu0 0.0
        %815 = vmatpush1.msra.mxu0 0.0
        %816 = vmatprep.subr.mxu0 0.0
        %817 = vmatpush1.msra.mxu0 0.0
        %818 = vmatprep.subr.mxu0 0.0
        %819 = vmatpush1.msra.mxu0 0.0
        %820 = vmatprep.subr.mxu0 0.0
        %821 = vmatpush1.msra.mxu0 0.0
        %822 = vmatprep.subr.mxu0 0.0
        %823 = vmatpush1.msra.mxu0 0.0
        %824 = vmatprep.subr.mxu0 0.0
        %825 = vmatpush1.msra.mxu0 0.0
        %826 = vmatprep.subr.mxu0 0.0
        %827 = vmatpush1.msra.mxu0 0.0
        %828 = vmatprep.subr.mxu0 0.0
        %829 = vmatpush1.msra.mxu0 0.0
        %830 = vmatprep.subr.mxu0 0.0
        %831 = vmatpush1.msra.mxu0 0.0
        %832 = vmatprep.subr.mxu0 0.0
        %833 = vmatpush1.msra.mxu0 0.0
        %834 = vmatprep.subr.mxu0 0.0
        %835 = vmatpush1.msra.mxu0 %v710
        %836 = vmatprep.subr.mxu0 0.0
        %837 = vmatpush2.msra.mxu0 0.0
        %838 = vmatprep.subr.mxu0 0.0
        %839 = vmatpush2.msra.mxu0 0.0
        %840 = vmatprep.subr.mxu0 0.0
        %841 = vmatpush2.msra.mxu0 0.0
        %842 = vmatprep.subr.mxu0 0.0
        %843 = vmatpush2.msra.mxu0 0.0
        %844 = vmatprep.subr.mxu0 0.0
        %845 = vmatpush2.msra.mxu0 0.0
        %846 = vmatprep.subr.mxu0 0.0
        %847 = vmatpush2.msra.mxu0 0.0
        %848 = vmatprep.subr.mxu0 0.0
        %849 = vmatpush2.msra.mxu0 0.0
        %850 = vmatprep.subr.mxu0 0.0
        %851 = vmatpush2.msra.mxu0 0.0
        %852 = vmatprep.subr.mxu0 0.0
        %853 = vmatpush2.msra.mxu0 0.0
        %854 = vmatprep.subr.mxu0 0.0
        %855 = vmatpush2.msra.mxu0 0.0
        %856 = vmatprep.subr.mxu0 0.0
        %857 = vmatpush2.msra.mxu0 0.0
        %858 = vmatprep.subr.mxu0 0.0
        %859 = vmatpush2.msra.mxu0 0.0
        %860 = vmatprep.subr.mxu0 0.0
        %861 = vmatpush2.msra.mxu0 0.0
        %862 = vmatprep.subr.mxu0 0.0
        %863 = vmatpush2.msra.mxu0 0.0
        %864 = vmatprep.subr.mxu0 0.0
        %865 = vmatpush2.msra.mxu0 0.0
        %866 = vmatprep.subr.mxu0 0.0
        %867 = vmatpush2.msra.mxu0 0.0
        %868 = vmatprep.mubr.f32.mxu0 0.0
        %869 = vmatmul.mubr.f32.gmra.mxu0 %v802
        %v870 = vpop.f32.mrf.mxu0
        %v871 = vadd.f32 %v799, %v870
        %v872 = vpop.f32.mrf.mxu0
        %873 = vdwg.mxu0
        %v874 = vxor.u32 %v871, 2147483648
        %v875 = vmul.f32 %v874, 1.442695
        %v876 = vpow.pop %v875
        %v877 = vadd.f32 %v876, 1.0
        %v878 = vrcp.pop %v877
        %v879 = vmul.f32 1.0, %v878
        %v880 = vlaneseq
        %v881 = vshrl.u32 %v880, 7
        %v882 = vsub.s32 0, %v881
        %v883 = vrot.slane %v795, %v882
        %885 = vbcast.lane.b32.xlu0 %v883, 256
        %v886 = vpop.permute.xlu0 %885
        %s888 = sor.u32 256, 8
        %889 = vbcast.lane.b32.xlu0 %v883, %s888
        %v890 = vpop.permute.xlu0 %889
        %v891 = vlaneseq
        %v892 = vshrl.u32 %v891, 7
        %v893 = vsub.s32 1, %v892
        %v894 = vrot.slane %v795, %v893
        %896 = vbcast.lane.b32.xlu0 %v894, 256
        %v897 = vpop.permute.xlu0 %896
        %s899 = sor.u32 256, 8
        %900 = vbcast.lane.b32.xlu0 %v894, %s899
        %v901 = vpop.permute.xlu0 %900
        %v902 = vlaneseq
        %v903 = vshrl.u32 %v902, 7
        %v904 = vsub.s32 2, %v903
        %v905 = vrot.slane %v795, %v904
        %907 = vbcast.lane.b32.xlu0 %v905, 256
        %v908 = vpop.permute.xlu0 %907
        %s910 = sor.u32 256, 8
        %911 = vbcast.lane.b32.xlu0 %v905, %s910
        %v912 = vpop.permute.xlu0 %911
        %v913 = vlaneseq
        %v914 = vshrl.u32 %v913, 7
        %v915 = vsub.s32 3, %v914
        %v916 = vrot.slane %v795, %v915
        %918 = vbcast.lane.b32.xlu0 %v916, 256
        %v919 = vpop.permute.xlu0 %918
        %s921 = sor.u32 256, 8
        %922 = vbcast.lane.b32.xlu0 %v916, %s921
        %v923 = vpop.permute.xlu0 %922
        %v926 = vunpack.c.l.s4 1966171168
        %v927 = vunpack.c.0.s8 %v926
        %v928 = vlaneseq
        %v929 = vshrl.u32 %v928, 7
        %v930 = vsub.s32 %v927, %v929
        %v931 = vrot.slane %v879, %v930
        %v932 = vcombine.high %v931, %v931
        %v934 = vunpack.c.l.s4 1966171168
        %v935 = vunpack.c.0.s8 %v934
        %v936 = vlaneseq
        %v937 = vshrl.u32 %v936, 7
        %v938 = vsub.s32 %v935, %v937
        %v939 = vrot.slane %v931, %v938
        %v941 = vunpack.c.l.s4 1966171168
        %v942 = vunpack.c.0.s8 %v941
        %v943 = vlaneseq
        %v944 = vshrl.u32 %v943, 7
        %v945 = vsub.s32 %v942, %v944
        %v946 = vrot.slane %v932, %v945
        %v947 = vcombine.high %v939, %v939
        %v948 = vcombine.high %v946, %v946
        %v949 = vlaneseq
        %v950 = vshrl.u32 %v949, 7
        %v951 = vsub.s32 0, %v950
        %v952 = vrot.slane %v939, %v951
        %v953 = vlaneseq
        %v954 = vshrl.u32 %v953, 7
        %v955 = vsub.s32 0, %v954
        %v956 = vrot.slane %v946, %v955
        %v957 = vlaneseq
        %v958 = vshrl.u32 %v957, 7
        %v959 = vsub.s32 0, %v958
        %v960 = vrot.slane %v947, %v959
        %v961 = vlaneseq
        %v962 = vshrl.u32 %v961, 7
        %v963 = vsub.s32 0, %v962
        %v964 = vrot.slane %v948, %v963
        %v969 = vmul.f32 %v886, %v952
        %v970 = vmul.f32 %v890, %v952
        %v971 = vmul.f32 %v897, %v956
        %v972 = vmul.f32 %v901, %v956
        %v973 = vmul.f32 %v908, %v960
        %v974 = vmul.f32 %v912, %v960
        %v975 = vmul.f32 %v919, %v964
        %v976 = vmul.f32 %v923, %v964
        %v977 = vcombine.low %v969, %v973
        %v978 = vcombine.high %v969, %v973
        %v980 = vunpack.c.l.s4 1983009808
        %v981 = vunpack.c.0.s8 %v980
        %v982 = vlaneseq
        %v983 = vshrl.u32 %v982, 7
        %v984 = vsub.s32 %v981, %v983
        %v985 = vrot.slane %v977, %v984
        %v987 = vunpack.c.l.s4 1983009808
        %v988 = vunpack.c.0.s8 %v987
        %v989 = vlaneseq
        %v990 = vshrl.u32 %v989, 7
        %v991 = vsub.s32 %v988, %v990
        %v992 = vrot.slane %v978, %v991
        %v993 = vcombine.low %v971, %v975
        %v994 = vcombine.high %v971, %v975
        %v996 = vunpack.c.l.s4 1983009808
        %v997 = vunpack.c.0.s8 %v996
        %v998 = vlaneseq
        %v999 = vshrl.u32 %v998, 7
        %v1000 = vsub.s32 %v997, %v999
        %v1001 = vrot.slane %v993, %v1000
        %v1003 = vunpack.c.l.s4 1983009808
        %v1004 = vunpack.c.0.s8 %v1003
        %v1005 = vlaneseq
        %v1006 = vshrl.u32 %v1005, 7
        %v1007 = vsub.s32 %v1004, %v1006
        %v1008 = vrot.slane %v994, %v1007
        %v1009 = vcombine.low %v985, %v1001
        %v1010 = vcombine.high %v985, %v1001
        %v1012 = vunpack.c.l.s4 1934713408
        %v1013 = vunpack.c.0.s8 %v1012
        %v1014 = vlaneseq
        %v1015 = vshrl.u32 %v1014, 7
        %v1016 = vsub.s32 %v1013, %v1015
        %v1017 = vrot.slane %v1009, %v1016
        %v1019 = vunpack.c.l.s4 1934713408
        %v1020 = vunpack.c.0.s8 %v1019
        %v1021 = vlaneseq
        %v1022 = vshrl.u32 %v1021, 7
        %v1023 = vsub.s32 %v1020, %v1022
        %v1024 = vrot.slane %v1010, %v1023
        %v1025 = vcombine.low %v992, %v1008
        %v1026 = vcombine.high %v992, %v1008
        %v1028 = vunpack.c.l.s4 1934713408
        %v1029 = vunpack.c.0.s8 %v1028
        %v1030 = vlaneseq
        %v1031 = vshrl.u32 %v1030, 7
        %v1032 = vsub.s32 %v1029, %v1031
        %v1033 = vrot.slane %v1025, %v1032
        %v1035 = vunpack.c.l.s4 1934713408
        %v1036 = vunpack.c.0.s8 %v1035
        %v1037 = vlaneseq
        %v1038 = vshrl.u32 %v1037, 7
        %v1039 = vsub.s32 %v1036, %v1038
        %v1040 = vrot.slane %v1026, %v1039
        %v1041 = vcombine.high %v1017, 0.0
        %v1042 = vcombine.high %v1024, 0.0
        %v1043 = vcombine.high %v1033, 0.0
        %v1044 = vcombine.high %v1040, 0.0
        %v1045 = vcombine.low %v970, %v974
        %v1046 = vcombine.high %v970, %v974
        %v1048 = vunpack.c.l.s4 1983009808
        %v1049 = vunpack.c.0.s8 %v1048
        %v1050 = vlaneseq
        %v1051 = vshrl.u32 %v1050, 7
        %v1052 = vsub.s32 %v1049, %v1051
        %v1053 = vrot.slane %v1045, %v1052
        %v1055 = vunpack.c.l.s4 1983009808
        %v1056 = vunpack.c.0.s8 %v1055
        %v1057 = vlaneseq
        %v1058 = vshrl.u32 %v1057, 7
        %v1059 = vsub.s32 %v1056, %v1058
        %v1060 = vrot.slane %v1046, %v1059
        %v1061 = vcombine.low %v972, %v976
        %v1062 = vcombine.high %v972, %v976
        %v1064 = vunpack.c.l.s4 1983009808
        %v1065 = vunpack.c.0.s8 %v1064
        %v1066 = vlaneseq
        %v1067 = vshrl.u32 %v1066, 7
        %v1068 = vsub.s32 %v1065, %v1067
        %v1069 = vrot.slane %v1061, %v1068
        %v1071 = vunpack.c.l.s4 1983009808
        %v1072 = vunpack.c.0.s8 %v1071
        %v1073 = vlaneseq
        %v1074 = vshrl.u32 %v1073, 7
        %v1075 = vsub.s32 %v1072, %v1074
        %v1076 = vrot.slane %v1062, %v1075
        %v1077 = vcombine.low %v1053, %v1069
        %v1078 = vcombine.high %v1053, %v1069
        %v1080 = vunpack.c.l.s4 1934713408
        %v1081 = vunpack.c.0.s8 %v1080
        %v1082 = vlaneseq
        %v1083 = vshrl.u32 %v1082, 7
        %v1084 = vsub.s32 %v1081, %v1083
        %v1085 = vrot.slane %v1077, %v1084
        %v1087 = vunpack.c.l.s4 1934713408
        %v1088 = vunpack.c.0.s8 %v1087
        %v1089 = vlaneseq
        %v1090 = vshrl.u32 %v1089, 7
        %v1091 = vsub.s32 %v1088, %v1090
        %v1092 = vrot.slane %v1078, %v1091
        %v1093 = vcombine.low %v1060, %v1076
        %v1094 = vcombine.high %v1060, %v1076
        %v1096 = vunpack.c.l.s4 1934713408
        %v1097 = vunpack.c.0.s8 %v1096
        %v1098 = vlaneseq
        %v1099 = vshrl.u32 %v1098, 7
        %v1100 = vsub.s32 %v1097, %v1099
        %v1101 = vrot.slane %v1093, %v1100
        %v1103 = vunpack.c.l.s4 1934713408
        %v1104 = vunpack.c.0.s8 %v1103
        %v1105 = vlaneseq
        %v1106 = vshrl.u32 %v1105, 7
        %v1107 = vsub.s32 %v1104, %v1106
        %v1108 = vrot.slane %v1094, %v1107
        %v1109 = vcombine.high %v1085, 0.0
        %v1110 = vcombine.high %v1092, 0.0
        %v1111 = vcombine.high %v1101, 0.0
        %v1112 = vcombine.high %v1108, 0.0
        %1114 = vrot.lane.b32.xlu0 %v1041, 16
        %v1115 = vpop.permute.xlu0 %1114
        %1118 = vrot.lane.b32.xlu0 %v1024, 32
        %v1119 = vpop.permute.xlu0 %1118
        %1122 = vrot.lane.b32.xlu0 %v1042, 48
        %v1123 = vpop.permute.xlu0 %1122
        %1126 = vrot.lane.b32.xlu0 %v1033, 64
        %v1127 = vpop.permute.xlu0 %1126
        %1130 = vrot.lane.b32.xlu0 %v1043, 80
        %v1131 = vpop.permute.xlu0 %1130
        %1134 = vrot.lane.b32.xlu0 %v1040, 96
        %v1135 = vpop.permute.xlu0 %1134
        %1138 = vrot.lane.b32.xlu0 %v1044, 112
        %v1139 = vpop.permute.xlu0 %1138
        %1142 = vrot.lane.b32.xlu0 %v1109, 16
        %v1143 = vpop.permute.xlu0 %1142
        %1146 = vrot.lane.b32.xlu0 %v1092, 32
        %v1147 = vpop.permute.xlu0 %1146
        %1150 = vrot.lane.b32.xlu0 %v1110, 48
        %v1151 = vpop.permute.xlu0 %1150
        %1154 = vrot.lane.b32.xlu0 %v1101, 64
        %v1155 = vpop.permute.xlu0 %1154
        %1158 = vrot.lane.b32.xlu0 %v1111, 80
        %v1159 = vpop.permute.xlu0 %1158
        %1162 = vrot.lane.b32.xlu0 %v1108, 96
        %v1163 = vpop.permute.xlu0 %1162
        %1166 = vrot.lane.b32.xlu0 %v1112, 112
        %v1167 = vpop.permute.xlu0 %1166
        %vm1169 = vcmask 130048
        %v1170 = vsel %vm1169, %v1017, %v1115
        %vm1171 = vcmask 261120
        %v1172 = vsel %vm1171, %v1170, %v1119
        %vm1173 = vcmask 392192
        %v1174 = vsel %vm1173, %v1172, %v1123
        %vm1175 = vcmask 523264
        %v1176 = vsel %vm1175, %v1174, %v1127
        %vm1177 = vcmask 654336
        %v1178 = vsel %vm1177, %v1176, %v1131
        %vm1179 = vcmask 785408
        %v1180 = vsel %vm1179, %v1178, %v1135
        %vm1181 = vcmask 916480
        %v1182 = vsel %vm1181, %v1180, %v1139
        %v1183 = vsel %vm1169, %v1085, %v1143
        %v1184 = vsel %vm1171, %v1183, %v1147
        %v1185 = vsel %vm1173, %v1184, %v1151
        %v1186 = vsel %vm1175, %v1185, %v1155
        %v1187 = vsel %vm1177, %v1186, %v1159
        %v1188 = vsel %vm1179, %v1187, %v1163
        %v1189 = vsel %vm1181, %v1188, %v1167
        %v1192 = vcombine.low %v1182, %v1189
        %v1194 = vmul.f32 %v401, %v1192
        %1195 = vst [vmem:[%s325] sm:$0xff] %v1194
        %s1196 = sand.u32 %s225, 1
        %s1197 = scalar_lea.sflag [#allocation3], %s1196
        %s1198 = sand.u32 %s225, 1
        %s1199 = smul.addr %s1198, 8
        %s1200 = scalar_lea.vmem [#allocation2], %s1199
        // Predicated region
        $region57: #{tpu_custom_call.1} parent=55 // pred_check
          %p1201 = pneg %p235
        $region58: #{tpu_custom_call.1} parent=55 // pred_check_branch
          %1203 = sbr.rel (%p1201) target = $region60
        $region59: #{tpu_custom_call.1} parent=55 // pred_region
          %s1205 = ssub.s32 128, 128
          %1206 = vsyncadd %s1197, %s1205
          %s1207 = smul.addr %s23, 2
          %s1208 = smul.addr %s1207, 64
          %s1209 = scalar_lea.hbm %s9, %s1208
          %s1211 = sshll.u32 %s1200, 4
          %s1212 = int_to_ptr.vmem [resolvable:$true] %s1211
          %1214 = dma.vmem_to_hbm [thread:$0]  %s1212, 128, %s1209, %s1197
        $region60: #{tpu_custom_call.1} parent=55 // pred_fallthru
          _
      $region56: #{tpu_custom_call.1} parent=5 // pred_fallthru
        _
      %p1215 = scmp.le.s32.totalorder 2, %s18
      // Predicated region
      $region61: #{tpu_custom_call.1} parent=5 // pred_check
        %p1216 = pneg %p1215
      $region62: #{tpu_custom_call.1} parent=5 // pred_check_branch
        %1218 = sbr.rel (%p1216) target = $region64
      $region63: #{tpu_custom_call.1} parent=5 // pred_region
        %s1219 = ssub.s32 %s18, 2
        // Predicated region
        $region65: #{tpu_custom_call.1} parent=63 // pred_check
          %p1220 = pneg %p241
        $region66: #{tpu_custom_call.1} parent=63 // pred_check_branch
          %1222 = sbr.rel (%p1220) target = $region68
        $region67: #{tpu_custom_call.1} parent=63 // pred_region
          %s1223 = sand.u32 %s226, 1
          %s1224 = scalar_lea.sflag [#allocation3], %s1223
          %s1225 = sand.u32 %s226, 1
          %s1226 = smul.addr %s1225, 8
          %s1227 = scalar_lea.vmem [#allocation2], %s1226
          %1228 = dma.done %s1224, 128
        $region68: #{tpu_custom_call.1} parent=63 // pred_fallthru
          _
      $region64: #{tpu_custom_call.1} parent=5 // pred_fallthru
        _
    $region6: #{tpu_custom_call.1} parent=1 // loop_footer
      %s22 = sadd.s32 1, %s18
    $region7: #{tpu_custom_call.1} parent=1 // loop_footer_branch
      %17 = sbr.rel target = $region3
    $region8: #{tpu_custom_call.1} parent=1 // loop_exit
      _
    %1229 = vsyncpa [#allocation3], 1
    %s1230 = scalar_lea.sflag [#allocation3], 1
    %1231 = vsyncpa %s1230, 1

</llo_original>
